<compile_context>
chip_gen: v5e
topology: v5e:2x2
jax: 0.10.0
libtpu: 0.0.40
codegen_flags: <defaults>
</compile_context>

<pallas_src>
import functools
import math
from itertools import chain, combinations_with_replacement

import jax
import jax.numpy as jnp
from jax.experimental import pallas as pl
from jax.experimental.pallas import tpu as pltpu


# ----------------------------------------------------------------------------
# static helpers
# ----------------------------------------------------------------------------
def _poly_feature_indices(n_vars: int, degree: int, include_bias: bool = True):
    """Static index tuples, identical ordering to sklearn / the PyTorch module."""
    start = int(not include_bias)
    return tuple(
        tuple(c)
        for c in chain.from_iterable(
            combinations_with_replacement(range(n_vars), i)
            for i in range(start, degree + 1)
        )
    )


def _vmem_capacity_bytes() -> int:
    """Generation-aware VMEM capacity (v5e/v6e: 128 MiB, v7x: 64 MiB/TC)."""
    try:
        info = pltpu.get_tpu_info()
        cap = int(getattr(info, "vmem_capacity_bytes", 0) or 0)
        if cap > 0:
            return cap
    except Exception:
        pass
    return 64 << 20  # conservative fallback (v7x per-TC VMEM)


def _choose_block_rows(B, D, K, degree, out_tiles, in_item, out_item,
                       budget_bytes, requested=None, out_block_target=4 << 20):
    """Pick a sublane-pack aligned batch tile under the VMEM budget.

    Returns (tb, per_row_bytes).  per_row accounts for double-buffered
    input/output tiles plus the in-kernel f32 temporaries (K rolled views +
    ~degree live DFS partial products + slack).
    """
    pack = max(8, 32 // min(in_item, out_item))     # 8 f32 / 16 bf16 / 32 int8
    per_row = D * (2 * in_item + 2 * out_tiles * out_item
                   + 4 * (K + degree + 3))
    tb_budget = max(1, budget_bytes // per_row)
    if requested is not None:
        tb = int(requested)
    else:
        # target a ~4 MiB output block (sweet spot for writeback DMA size)
        tb = min(tb_budget,
                 max(1, out_block_target // max(1, out_tiles * D * out_item)))
        # keep >=2 grid steps when the batch allows (megacore / v7x dual-TC)
        if B >= 2 * pack:
            half = ((B + 1) // 2 + pack - 1) // pack * pack
            tb = min(tb, half)
    tb = min(tb, tb_budget, B)          # never exceed the VMEM budget
    if tb >= B:
        return B, per_row               # single full block (block == array dims)
    tb = max(pack, (tb // pack) * pack)
    return min(tb, B), per_row


def _prep(x, degree, num_neighbours, include_bias):
    orig_shape = x.shape
    D = orig_shape[-1]
    assert D >= 3, "module requires dim >= 3"
    lead = orig_shape[:-1]
    B = math.prod(lead) if lead else 1
    shifts = tuple(i - num_neighbours for i in range(2 * num_neighbours + 1))
    K = len(shifts)
    feature_inds = _poly_feature_indices(K, degree, include_bias)
    return x.reshape(B, D), lead, B, D, shifts, K, feature_inds


def _vmem_limit(cap, need_bytes):
    return int(min(cap * 3 // 4, max(need_bytes * 3 // 2 + (4 << 20), 32 << 20)))


# ----------------------------------------------------------------------------
# kernels
# ----------------------------------------------------------------------------
def _poly_kernel(x_ref, o_ref, *, shifts, feature_inds, degree):
    # x_ref : (tb, D)      current batch tile, spatial axis on lanes
    # o_ref : (F, tb, D)   one lane-dense (tb, D) slab per polynomial feature
    x = x_ref[...].astype(jnp.float32)      # compute in f32 (matches fp32 module)
    D = x.shape[-1]
    K = len(shifts)
    # Neighbour views via in-kernel circular rolls along the lane axis (XLU).
    xs = [x if (s % D) == 0 else pltpu.roll(x, s % D, 1) for s in shifts]

    feat_idx = {tup: f for f, tup in enumerate(feature_inds)}
    odt = o_ref.dtype

    # DFS over the prefix tree: exactly one VPU multiply per feature, and only
    # ~degree partial products are live at any time (short live ranges -> no
    # spills even with large tiles).  Stores use the statically known feature
    # index, so the output ordering matches combinations_with_replacement.
    def dfs(tup, prod):
        f = feat_idx.get(tup)
        if f is not None:
            o_ref[f] = prod.astype(odt)
        if len(tup) < degree:
            lo = tup[-1] if tup else 0
            for v in range(lo, K):
                dfs(tup + (v,), xs[v] if not tup else prod * xs[v])

    dfs((), jnp.ones_like(x))               # root: bias (ones) if included


def _poly_weighted_kernel(w_ref, x_ref, o_ref, *, shifts, feature_inds, degree):
    # Fused: o = sum_f w[f] * feature_f(x); the feature tensor never hits HBM.
    # w_ref : SMEM (F,) f32 ; x_ref : (tb, D) ; o_ref : (tb, D)
    x = x_ref[...].astype(jnp.float32)
    D = x.shape[-1]
    K = len(shifts)
    xs = [x if (s % D) == 0 else pltpu.roll(x, s % D, 1) for s in shifts]
    feat_idx = {tup: f for f, tup in enumerate(feature_inds)}

    def dfs(tup, prod, acc):
        f = feat_idx.get(tup)
        if f is not None and tup:            # bias handled as a constant below
            acc = acc + prod * w_ref[f]
        if len(tup) < degree:
            lo = tup[-1] if tup else 0
            for v in range(lo, K):
                acc = dfs(tup + (v,), xs[v] if not tup else prod * xs[v], acc)
        return acc

    acc = jnp.zeros_like(x)
    bias = feat_idx.get(())
    if bias is not None:
        acc = acc + w_ref[bias]
    acc = dfs((), x, acc)                    # root prod placeholder is unused
    o_ref[...] = acc.astype(o_ref.dtype)


# ----------------------------------------------------------------------------
# wrappers
# ----------------------------------------------------------------------------
def sparse_polynomial_neighbour_1d(x, *, degree=2, num_neighbours=2,
                                   include_bias=True, block_rows=None,
                                   out_dtype=None, layout="fbd"):
    """Pallas forward of SparsePolynomialNeighbour1D.

    layout="fbd" (default): (F, ..., D), the kernel's lane-dense layout (no
    wrapper transpose of the dominant F*B*D output).
    layout="bdf": (..., D, F), the exact PyTorch module contract (adds one
    full read+write of the output).
    """
    x2, lead, B, D, shifts, K, feature_inds = _prep(
        x, degree, num_neighbours, include_bias)
    F = len(feature_inds)
    out_dtype = jnp.dtype(x.dtype if out_dtype is None else out_dtype)
    in_item = jnp.dtype(x.dtype).itemsize
    out_item = out_dtype.itemsize

    cap = _vmem_capacity_bytes()
    budget = min(cap * 3 // 8, 48 << 20)     # generation-aware tiling budget
    tb, per_row = _choose_block_rows(B, D, K, degree, F, in_item, out_item,
                                     budget, block_rows)
    grid = (pl.cdiv(B, tb),)                 # partial last block is fine: rows
                                             # are independent, rolls are along D
    vmem_limit = _vmem_limit(cap, tb * per_row)

    kernel = functools.partial(_poly_kernel, shifts=shifts,
                               feature_inds=feature_inds, degree=degree)

    out_fbd = pl.pallas_call(
        kernel,
        out_shape=jax.ShapeDtypeStruct((F, B, D), out_dtype),
        grid=grid,
        in_specs=[pl.BlockSpec((tb, D), lambda i: (i, 0))],
        out_specs=pl.BlockSpec((F, tb, D), lambda i: (0, i, 0)),
        compiler_params=pltpu.CompilerParams(
            # "parallel" lets Mosaic shard the batch axis across TensorCores
            # (v7x megacore); switch to pltpu.CORE_PARALLEL if profiling shows
            # the axis is not being split.
            dimension_semantics=("parallel",),
            vmem_limit_bytes=vmem_limit),
    )(x2)

    if layout == "fbd":
        return (out_fbd.reshape((F,) + lead + (D,)) if lead
                else out_fbd.reshape(F, D))
    assert layout == "bdf", f"unknown layout {layout!r}"
    # Exact PyTorch contract (..., D, F).  NOTE: this transpose re-reads and
    # re-writes the full F*B*D output; prefer layout="fbd" or the fused
    # *_weighted entry point when downstream allows.
    out = jnp.transpose(out_fbd, (1, 2, 0))
    return out.reshape(lead + (D, F))


def sparse_polynomial_neighbour_1d_weighted(x, w, *, degree=2, num_neighbours=2,
                                            include_bias=True, block_rows=None,
                                            out_dtype=None):
    """Fused variant: returns sum_f w[f] * feature_f(x), shape (..., D).

    Removes the ~F x HBM writeback that dominates the standalone kernel by
    contracting the features against the GLM weight vector inside VMEM.
    """
    x2, lead, B, D, shifts, K, feature_inds = _prep(
        x, degree, num_neighbours, include_bias)
    F = len(feature_inds)
    assert w.shape == (F,), f"expected weights of shape ({F},), got {w.shape}"
    out_dtype = jnp.dtype(x.dtype if out_dtype is None else out_dtype)
    in_item = jnp.dtype(x.dtype).itemsize
    out_item = out_dtype.itemsize

    cap = _vmem_capacity_bytes()
    budget = min(cap * 3 // 8, 48 << 20)
    tb, per_row = _choose_block_rows(B, D, K, degree, 1, in_item, out_item,
                                     budget, block_rows)
    grid = (pl.cdiv(B, tb),)
    vmem_limit = _vmem_limit(cap, tb * per_row)

    kernel = functools.partial(_poly_weighted_kernel, shifts=shifts,
                               feature_inds=feature_inds, degree=degree)

    out = pl.pallas_call(
        kernel,
        out_shape=jax.ShapeDtypeStruct((B, D), out_dtype),
        grid=grid,
        in_specs=[pl.BlockSpec(memory_space=pltpu.MemorySpace.SMEM),
                  pl.BlockSpec((tb, D), lambda i: (i, 0))],
        out_specs=pl.BlockSpec((tb, D), lambda i: (i, 0)),
        compiler_params=pltpu.CompilerParams(
            dimension_semantics=("parallel",),
            vmem_limit_bytes=vmem_limit),
    )(w.astype(jnp.float32), x2)

    return out.reshape(lead + (D,)) if lead else out.reshape(D)


# ----------------------------------------------------------------------------
# pure-JAX reference (mirrors the PyTorch forward exactly, f32)
# ----------------------------------------------------------------------------
def _reference(x, *, degree=2, num_neighbours=2, include_bias=True):
    shifts = [i - num_neighbours for i in range(2 * num_neighbours + 1)]
    feature_inds = _poly_feature_indices(len(shifts), degree, include_bias)
    x_in = jnp.stack([jnp.roll(x, s, axis=-1) for s in shifts], axis=-1)
    x_in = x_in.astype(jnp.float32)
    feats = []
    for ind in feature_inds:
        if len(ind) == 0:
            feats.append(jnp.ones(x.shape, jnp.float32))
        else:
            p = x_in[..., ind[0]]
            for i in ind[1:]:
                p = p * x_in[..., i]
            feats.append(p)
    return jnp.stack(feats, axis=-1)          # (..., D, F)


if __name__ == "__main__":
    key = jax.random.PRNGKey(0)
    k0, k1, k2, k3 = jax.random.split(key, 4)

    # 1) default layout="fbd", degree-2, 2 neighbours, auto tiling (grid of 2)
    x1 = jax.random.normal(k0, (2, 16, 128), dtype=jnp.float32)   # B=32, D=128
    out1 = jax.block_until_ready(
        sparse_polynomial_neighbour_1d(x1, degree=2, num_neighbours=2))
    ref1 = _reference(x1, degree=2, num_neighbours=2)             # (..., D, F)
    assert out1.shape == (21, 2, 16, 128), out1.shape             # F = 1+5+15
    assert jnp.allclose(out1, jnp.moveaxis(ref1, -1, 0), atol=1e-5, rtol=1e-5)

    # 2) exact PyTorch layout (..., D, F), degree-3, 1 neighbour, single block
    x2 = jax.random.normal(k1, (8, 256), dtype=jnp.float32)
    out2 = jax.block_until_ready(
        sparse_polynomial_neighbour_1d(x2, degree=3, num_neighbours=1,
                                       layout="bdf"))
    ref2 = _reference(x2, degree=3, num_neighbours=1)
    assert out2.shape == (8, 256, 20), out2.shape                 # F = 1+3+6+10
    assert jnp.allclose(out2, ref2, atol=1e-5, rtol=1e-5)

    # 3) cdiv grid with a partial last block (B=40, tb=16 -> 3 grid steps)
    x3 = jax.random.normal(k2, (40, 128), dtype=jnp.float32)
    out3 = jax.block_until_ready(
        sparse_polynomial_neighbour_1d(x3, degree=2, num_neighbours=2,
                                       block_rows=16))
    ref3 = _reference(x3, degree=2, num_neighbours=2)
    assert out3.shape == (21, 40, 128), out3.shape
    assert jnp.allclose(out3, jnp.moveaxis(ref3, -1, 0), atol=1e-5, rtol=1e-5)

    # 4) bf16 output option (f32 compute, bf16 writeback -> half the HBM bytes)
    out4 = jax.block_until_ready(
        sparse_polynomial_neighbour_1d(x1, degree=2, num_neighbours=2,
                                       out_dtype=jnp.bfloat16))
    assert out4.dtype == jnp.bfloat16
    assert jnp.allclose(out4.astype(jnp.float32), jnp.moveaxis(ref1, -1, 0),
                        atol=5e-2, rtol=2e-2)

    # 5) fused feature x weight contraction (feature tensor never hits HBM)
    w = jax.random.normal(k3, (21,), dtype=jnp.float32)
    out5 = jax.block_until_ready(
        sparse_polynomial_neighbour_1d_weighted(x1, w, degree=2,
                                                num_neighbours=2))
    ref5 = jnp.einsum("...f,f->...", ref1, w)
    assert out5.shape == (2, 16, 128), out5.shape
    assert jnp.allclose(out5, ref5, atol=5e-4, rtol=5e-4)

    print("KERNEL_OK")
</pallas_src>

<mosaic_0001>
module attributes {stable_mosaic.version = 11 : i64} {
  func.func @_poly_kernel(%arg0: i32, %arg1: memref<16x128xf32, #tpu.memory_space<vmem>>, %arg2: memref<21x16x128xf32, #tpu.memory_space<vmem>>) attributes {dimension_semantics = [#tpu.dimension_semantics<parallel>], iteration_bounds = array<i64: 2>, scalar_prefetch = 0 : i64, scratch_operands = 0 : i64, tpu.core_type = #tpu.core_type<tc>, window_params = [{transform_indices = @transform_0, window_bounds = array<i64: 16, 128>}, {transform_indices = @transform_1, window_bounds = array<i64: 21, 16, 128>}]} {
    %c0 = arith.constant 0 : index
    %c0_0 = arith.constant 0 : index
    %0 = vector.load %arg1[%c0, %c0_0] : memref<16x128xf32, #tpu.memory_space<vmem>>, vector<16x128xf32>
    %c126_i32 = arith.constant 126 : i32
    %1 = tpu.dynamic_rotate %0 by %c126_i32 dim 1 : vector<16x128xf32>, i32 -> vector<16x128xf32>
    %c127_i32 = arith.constant 127 : i32
    %2 = tpu.dynamic_rotate %0 by %c127_i32 dim 1 : vector<16x128xf32>, i32 -> vector<16x128xf32>
    %c1_i32 = arith.constant 1 : i32
    %3 = tpu.dynamic_rotate %0 by %c1_i32 dim 1 : vector<16x128xf32>, i32 -> vector<16x128xf32>
    %c2_i32 = arith.constant 2 : i32
    %4 = tpu.dynamic_rotate %0 by %c2_i32 dim 1 : vector<16x128xf32>, i32 -> vector<16x128xf32>
    %cst = arith.constant 1.000000e+00 : f32
    %5 = vector.broadcast %cst : f32 to vector<16x128xf32>
    %c0_1 = arith.constant 0 : index
    %c0_2 = arith.constant 0 : index
    %c0_3 = arith.constant 0 : index
    %6 = vector.load %arg2[%c0_1, %c0_2, %c0_3] : memref<21x16x128xf32, #tpu.memory_space<vmem>>, vector<1x16x128xf32>
    %7 = vector.shape_cast %6 : vector<1x16x128xf32> to vector<16x128xf32>
    %8 = vector.shape_cast %5 : vector<16x128xf32> to vector<1x16x128xf32>
    tpu.vector_store %arg2[%c0_1, %c0_2, %c0_3], %8 {strides = array<i32>} : memref<21x16x128xf32, #tpu.memory_space<vmem>>, vector<1x16x128xf32>,
    %c1 = arith.constant 1 : index
    %c0_4 = arith.constant 0 : index
    %c0_5 = arith.constant 0 : index
    %9 = vector.load %arg2[%c1, %c0_4, %c0_5] : memref<21x16x128xf32, #tpu.memory_space<vmem>>, vector<1x16x128xf32>
    %10 = vector.shape_cast %9 : vector<1x16x128xf32> to vector<16x128xf32>
    %11 = vector.shape_cast %1 : vector<16x128xf32> to vector<1x16x128xf32>
    tpu.vector_store %arg2[%c1, %c0_4, %c0_5], %11 {strides = array<i32>} : memref<21x16x128xf32, #tpu.memory_space<vmem>>, vector<1x16x128xf32>,
    %12 = arith.mulf %1, %1 : vector<16x128xf32>
    %c6 = arith.constant 6 : index
    %c0_6 = arith.constant 0 : index
    %c0_7 = arith.constant 0 : index
    %13 = vector.load %arg2[%c6, %c0_6, %c0_7] : memref<21x16x128xf32, #tpu.memory_space<vmem>>, vector<1x16x128xf32>
    %14 = vector.shape_cast %13 : vector<1x16x128xf32> to vector<16x128xf32>
    %15 = vector.shape_cast %12 : vector<16x128xf32> to vector<1x16x128xf32>
    tpu.vector_store %arg2[%c6, %c0_6, %c0_7], %15 {strides = array<i32>} : memref<21x16x128xf32, #tpu.memory_space<vmem>>, vector<1x16x128xf32>,
    %16 = arith.mulf %1, %2 : vector<16x128xf32>
    %c7 = arith.constant 7 : index
    %c0_8 = arith.constant 0 : index
    %c0_9 = arith.constant 0 : index
    %17 = vector.load %arg2[%c7, %c0_8, %c0_9] : memref<21x16x128xf32, #tpu.memory_space<vmem>>, vector<1x16x128xf32>
    %18 = vector.shape_cast %17 : vector<1x16x128xf32> to vector<16x128xf32>
    %19 = vector.shape_cast %16 : vector<16x128xf32> to vector<1x16x128xf32>
    tpu.vector_store %arg2[%c7, %c0_8, %c0_9], %19 {strides = array<i32>} : memref<21x16x128xf32, #tpu.memory_space<vmem>>, vector<1x16x128xf32>,
    %20 = arith.mulf %1, %0 : vector<16x128xf32>
    %c8 = arith.constant 8 : index
    %c0_10 = arith.constant 0 : index
    %c0_11 = arith.constant 0 : index
    %21 = vector.load %arg2[%c8, %c0_10, %c0_11] : memref<21x16x128xf32, #tpu.memory_space<vmem>>, vector<1x16x128xf32>
    %22 = vector.shape_cast %21 : vector<1x16x128xf32> to vector<16x128xf32>
    %23 = vector.shape_cast %20 : vector<16x128xf32> to vector<1x16x128xf32>
    tpu.vector_store %arg2[%c8, %c0_10, %c0_11], %23 {strides = array<i32>} : memref<21x16x128xf32, #tpu.memory_space<vmem>>, vector<1x16x128xf32>,
    %24 = arith.mulf %1, %3 : vector<16x128xf32>
    %c9 = arith.constant 9 : index
    %c0_12 = arith.constant 0 : index
    %c0_13 = arith.constant 0 : index
    %25 = vector.load %arg2[%c9, %c0_12, %c0_13] : memref<21x16x128xf32, #tpu.memory_space<vmem>>, vector<1x16x128xf32>
    %26 = vector.shape_cast %25 : vector<1x16x128xf32> to vector<16x128xf32>
    %27 = vector.shape_cast %24 : vector<16x128xf32> to vector<1x16x128xf32>
    tpu.vector_store %arg2[%c9, %c0_12, %c0_13], %27 {strides = array<i32>} : memref<21x16x128xf32, #tpu.memory_space<vmem>>, vector<1x16x128xf32>,
    %28 = arith.mulf %1, %4 : vector<16x128xf32>
    %c10 = arith.constant 10 : index
    %c0_14 = arith.constant 0 : index
    %c0_15 = arith.constant 0 : index
    %29 = vector.load %arg2[%c10, %c0_14, %c0_15] : memref<21x16x128xf32, #tpu.memory_space<vmem>>, vector<1x16x128xf32>
    %30 = vector.shape_cast %29 : vector<1x16x128xf32> to vector<16x128xf32>
    %31 = vector.shape_cast %28 : vector<16x128xf32> to vector<1x16x128xf32>
    tpu.vector_store %arg2[%c10, %c0_14, %c0_15], %31 {strides = array<i32>} : memref<21x16x128xf32, #tpu.memory_space<vmem>>, vector<1x16x128xf32>,
    %c2 = arith.constant 2 : index
    %c0_16 = arith.constant 0 : index
    %c0_17 = arith.constant 0 : index
    %32 = vector.load %arg2[%c2, %c0_16, %c0_17] : memref<21x16x128xf32, #tpu.memory_space<vmem>>, vector<1x16x128xf32>
    %33 = vector.shape_cast %32 : vector<1x16x128xf32> to vector<16x128xf32>
    %34 = vector.shape_cast %2 : vector<16x128xf32> to vector<1x16x128xf32>
    tpu.vector_store %arg2[%c2, %c0_16, %c0_17], %34 {strides = array<i32>} : memref<21x16x128xf32, #tpu.memory_space<vmem>>, vector<1x16x128xf32>,
    %35 = arith.mulf %2, %2 : vector<16x128xf32>
    %c11 = arith.constant 11 : index
    %c0_18 = arith.constant 0 : index
    %c0_19 = arith.constant 0 : index
    %36 = vector.load %arg2[%c11, %c0_18, %c0_19] : memref<21x16x128xf32, #tpu.memory_space<vmem>>, vector<1x16x128xf32>
    %37 = vector.shape_cast %36 : vector<1x16x128xf32> to vector<16x128xf32>
    %38 = vector.shape_cast %35 : vector<16x128xf32> to vector<1x16x128xf32>
    tpu.vector_store %arg2[%c11, %c0_18, %c0_19], %38 {strides = array<i32>} : memref<21x16x128xf32, #tpu.memory_space<vmem>>, vector<1x16x128xf32>,
    %39 = arith.mulf %2, %0 : vector<16x128xf32>
    %c12 = arith.constant 12 : index
    %c0_20 = arith.constant 0 : index
    %c0_21 = arith.constant 0 : index
    %40 = vector.load %arg2[%c12, %c0_20, %c0_21] : memref<21x16x128xf32, #tpu.memory_space<vmem>>, vector<1x16x128xf32>
    %41 = vector.shape_cast %40 : vector<1x16x128xf32> to vector<16x128xf32>
    %42 = vector.shape_cast %39 : vector<16x128xf32> to vector<1x16x128xf32>
    tpu.vector_store %arg2[%c12, %c0_20, %c0_21], %42 {strides = array<i32>} : memref<21x16x128xf32, #tpu.memory_space<vmem>>, vector<1x16x128xf32>,
    %43 = arith.mulf %2, %3 : vector<16x128xf32>
    %c13 = arith.constant 13 : index
    %c0_22 = arith.constant 0 : index
    %c0_23 = arith.constant 0 : index
    %44 = vector.load %arg2[%c13, %c0_22, %c0_23] : memref<21x16x128xf32, #tpu.memory_space<vmem>>, vector<1x16x128xf32>
    %45 = vector.shape_cast %44 : vector<1x16x128xf32> to vector<16x128xf32>
    %46 = vector.shape_cast %43 : vector<16x128xf32> to vector<1x16x128xf32>
    tpu.vector_store %arg2[%c13, %c0_22, %c0_23], %46 {strides = array<i32>} : memref<21x16x128xf32, #tpu.memory_space<vmem>>, vector<1x16x128xf32>,
    %47 = arith.mulf %2, %4 : vector<16x128xf32>
    %c14 = arith.constant 14 : index
    %c0_24 = arith.constant 0 : index
    %c0_25 = arith.constant 0 : index
    %48 = vector.load %arg2[%c14, %c0_24, %c0_25] : memref<21x16x128xf32, #tpu.memory_space<vmem>>, vector<1x16x128xf32>
    %49 = vector.shape_cast %48 : vector<1x16x128xf32> to vector<16x128xf32>
    %50 = vector.shape_cast %47 : vector<16x128xf32> to vector<1x16x128xf32>
    tpu.vector_store %arg2[%c14, %c0_24, %c0_25], %50 {strides = array<i32>} : memref<21x16x128xf32, #tpu.memory_space<vmem>>, vector<1x16x128xf32>,
    %c3 = arith.constant 3 : index
    %c0_26 = arith.constant 0 : index
    %c0_27 = arith.constant 0 : index
    %51 = vector.load %arg2[%c3, %c0_26, %c0_27] : memref<21x16x128xf32, #tpu.memory_space<vmem>>, vector<1x16x128xf32>
    %52 = vector.shape_cast %51 : vector<1x16x128xf32> to vector<16x128xf32>
    %53 = vector.shape_cast %0 : vector<16x128xf32> to vector<1x16x128xf32>
    tpu.vector_store %arg2[%c3, %c0_26, %c0_27], %53 {strides = array<i32>} : memref<21x16x128xf32, #tpu.memory_space<vmem>>, vector<1x16x128xf32>,
    %54 = arith.mulf %0, %0 : vector<16x128xf32>
    %c15 = arith.constant 15 : index
    %c0_28 = arith.constant 0 : index
    %c0_29 = arith.constant 0 : index
    %55 = vector.load %arg2[%c15, %c0_28, %c0_29] : memref<21x16x128xf32, #tpu.memory_space<vmem>>, vector<1x16x128xf32>
    %56 = vector.shape_cast %55 : vector<1x16x128xf32> to vector<16x128xf32>
    %57 = vector.shape_cast %54 : vector<16x128xf32> to vector<1x16x128xf32>
    tpu.vector_store %arg2[%c15, %c0_28, %c0_29], %57 {strides = array<i32>} : memref<21x16x128xf32, #tpu.memory_space<vmem>>, vector<1x16x128xf32>,
    %58 = arith.mulf %0, %3 : vector<16x128xf32>
    %c16 = arith.constant 16 : index
    %c0_30 = arith.constant 0 : index
    %c0_31 = arith.constant 0 : index
    %59 = vector.load %arg2[%c16, %c0_30, %c0_31] : memref<21x16x128xf32, #tpu.memory_space<vmem>>, vector<1x16x128xf32>
    %60 = vector.shape_cast %59 : vector<1x16x128xf32> to vector<16x128xf32>
    %61 = vector.shape_cast %58 : vector<16x128xf32> to vector<1x16x128xf32>
    tpu.vector_store %arg2[%c16, %c0_30, %c0_31], %61 {strides = array<i32>} : memref<21x16x128xf32, #tpu.memory_space<vmem>>, vector<1x16x128xf32>,
    %62 = arith.mulf %0, %4 : vector<16x128xf32>
    %c17 = arith.constant 17 : index
    %c0_32 = arith.constant 0 : index
    %c0_33 = arith.constant 0 : index
    %63 = vector.load %arg2[%c17, %c0_32, %c0_33] : memref<21x16x128xf32, #tpu.memory_space<vmem>>, vector<1x16x128xf32>
    %64 = vector.shape_cast %63 : vector<1x16x128xf32> to vector<16x128xf32>
    %65 = vector.shape_cast %62 : vector<16x128xf32> to vector<1x16x128xf32>
    tpu.vector_store %arg2[%c17, %c0_32, %c0_33], %65 {strides = array<i32>} : memref<21x16x128xf32, #tpu.memory_space<vmem>>, vector<1x16x128xf32>,
    %c4 = arith.constant 4 : index
    %c0_34 = arith.constant 0 : index
    %c0_35 = arith.constant 0 : index
    %66 = vector.load %arg2[%c4, %c0_34, %c0_35] : memref<21x16x128xf32, #tpu.memory_space<vmem>>, vector<1x16x128xf32>
    %67 = vector.shape_cast %66 : vector<1x16x128xf32> to vector<16x128xf32>
    %68 = vector.shape_cast %3 : vector<16x128xf32> to vector<1x16x128xf32>
    tpu.vector_store %arg2[%c4, %c0_34, %c0_35], %68 {strides = array<i32>} : memref<21x16x128xf32, #tpu.memory_space<vmem>>, vector<1x16x128xf32>,
    %69 = arith.mulf %3, %3 : vector<16x128xf32>
    %c18 = arith.constant 18 : index
    %c0_36 = arith.constant 0 : index
    %c0_37 = arith.constant 0 : index
    %70 = vector.load %arg2[%c18, %c0_36, %c0_37] : memref<21x16x128xf32, #tpu.memory_space<vmem>>, vector<1x16x128xf32>
    %71 = vector.shape_cast %70 : vector<1x16x128xf32> to vector<16x128xf32>
    %72 = vector.shape_cast %69 : vector<16x128xf32> to vector<1x16x128xf32>
    tpu.vector_store %arg2[%c18, %c0_36, %c0_37], %72 {strides = array<i32>} : memref<21x16x128xf32, #tpu.memory_space<vmem>>, vector<1x16x128xf32>,
    %73 = arith.mulf %3, %4 : vector<16x128xf32>
    %c19 = arith.constant 19 : index
    %c0_38 = arith.constant 0 : index
    %c0_39 = arith.constant 0 : index
    %74 = vector.load %arg2[%c19, %c0_38, %c0_39] : memref<21x16x128xf32, #tpu.memory_space<vmem>>, vector<1x16x128xf32>
    %75 = vector.shape_cast %74 : vector<1x16x128xf32> to vector<16x128xf32>
    %76 = vector.shape_cast %73 : vector<16x128xf32> to vector<1x16x128xf32>
    tpu.vector_store %arg2[%c19, %c0_38, %c0_39], %76 {strides = array<i32>} : memref<21x16x128xf32, #tpu.memory_space<vmem>>, vector<1x16x128xf32>,
    %c5 = arith.constant 5 : index
    %c0_40 = arith.constant 0 : index
    %c0_41 = arith.constant 0 : index
    %77 = vector.load %arg2[%c5, %c0_40, %c0_41] : memref<21x16x128xf32, #tpu.memory_space<vmem>>, vector<1x16x128xf32>
    %78 = vector.shape_cast %77 : vector<1x16x128xf32> to vector<16x128xf32>
    %79 = vector.shape_cast %4 : vector<16x128xf32> to vector<1x16x128xf32>
    tpu.vector_store %arg2[%c5, %c0_40, %c0_41], %79 {strides = array<i32>} : memref<21x16x128xf32, #tpu.memory_space<vmem>>, vector<1x16x128xf32>,
    %80 = arith.mulf %4, %4 : vector<16x128xf32>
    %c20 = arith.constant 20 : index
    %c0_42 = arith.constant 0 : index
    %c0_43 = arith.constant 0 : index
    %81 = vector.load %arg2[%c20, %c0_42, %c0_43] : memref<21x16x128xf32, #tpu.memory_space<vmem>>, vector<1x16x128xf32>
    %82 = vector.shape_cast %81 : vector<1x16x128xf32> to vector<16x128xf32>
    %83 = vector.shape_cast %80 : vector<16x128xf32> to vector<1x16x128xf32>
    tpu.vector_store %arg2[%c20, %c0_42, %c0_43], %83 {strides = array<i32>} : memref<21x16x128xf32, #tpu.memory_space<vmem>>, vector<1x16x128xf32>,
    return
  }
  func.func @transform_0(%arg0: i32) -> (i32, i32) {
    %c0_i32 = arith.constant 0 : i32
    %c0_i32_0 = arith.constant 0 : i32
    return %arg0, %c0_i32 : i32, i32
  }
  func.func @transform_1(%arg0: i32) -> (i32, i32, i32) {
    %c0_i32 = arith.constant 0 : i32
    %c0_i32_0 = arith.constant 0 : i32
    %c0_i32_1 = arith.constant 0 : i32
    return %c0_i32, %arg0, %c0_i32_0 : i32, i32, i32
  }
}

</mosaic_0001>

<llo_original>
// kernel: tpu_custom_call.1
$region0: #{tpu_custom_call.1}
  #allocation0 [shape = 'u32[]', space=smem, size = 0x4, offset = 0x4, fixed_abs, tag = 'smem constant byte address 0x4 - core index']
  #allocation1 [shape = 'u32[72,128]{1,0:T(1,128)}', space=vmem, size = 0x9000, scoped, tag = 'internal scratch']
  #allocation6 [shape = 's32[]', space=sflag, size = 0x4, offset = 0, fixed_abs, tag = 'sflag constant byte address 0x0 - dummy sync flag']
  %s0 = inlined_call_operand.hbm [shape: f32[32,128], index: 0, kind: input, shape index: {}]
  %s1 = inlined_call_operand.hbm [shape: f32[21,32,128], index: 1, kind: output, shape index: {}]
  %s2 = sld [smem:[#allocation0]]
  $region41: #{tpu_custom_call.1} parent=0
    _
  %s4 = ssub.s32 1, %s2
  %s5 = scalar_select 0, %s4, %s2
  $region1: #{tpu_custom_call.1} parent=0
    #allocation2 [shape = 'u8[16384]{0}', space=vmem, size = 0x4000, scoped, tag = 'input window, operand 0']
    #allocation3 [shape = 's32[2]{0}', space=sflag, size = 0x8, scoped, tag = 'scoped memory for tpu_custom_call.1']
    #allocation4 [shape = 's32[2]{0}', space=sflag, size = 0x8, scoped, tag = 'scoped memory for tpu_custom_call.1']
    #allocation5 [shape = 'u8[344064]{0}', space=vmem, size = 0x54000, scoped, tag = 'output window, operand 0']
    %6 = vsyncpa [#allocation3], 0
    %s7 = scalar_lea.sflag [#allocation3], 1
    %8 = vsyncpa %s7, 0
    %9 = vsyncpa [#allocation4], 0
    %s10 = scalar_lea.sflag [#allocation4], 1
    %11 = vsyncpa %s10, 0
    loop: start=0, step=1, limit=4
    $region2: #{tpu_custom_call.1} parent=1 // loop_pre_header
      _
    $region3: #{tpu_custom_call.1} parent=1 // loop_header
      %s13 = sphi 0, %s17
      %p14 = scmp.ge.s32.totalorder %s13, 4
      %s23 = sphi 0, %s25
      %s26 = sphi 0, %s23
      %s27 = sphi 0, %s26
      %s43 = sphi 0, %s27
      %s49 = sphi 0, %s51
      %s52 = sphi 0, %s49
      %s53 = sphi 0, %s52
      %s69 = sphi 0, %s53
    $region4: #{tpu_custom_call.1} parent=1 // loop_header_branch
      %16 = sbr.rel (%p14) target = $region8
    $region5: #{tpu_custom_call.1} parent=1 // loop_body
      %s18 = ssub.s32 %s13, 1
      %s19 = ssub.s32 %s13, 2
      %s20 = sadd.s32 %s13, 1
      %s21 = ssub.s32 %s13, %s20
      %p22 = scmp.eq.s32.totalorder %s21, 0
      %s24 = sadd.s32 %s23, 1
      %s25 = scalar_select %p22, %s23, %s24
      %p28 = pneg %p22
      %p29 = scmp.eq.s32.totalorder %s13, 1
      %p30 = por %p28, %p29
      %p31 = scmp.ne.s32.totalorder %s23, %s26
      %p32 = scmp.eq.s32.totalorder %s13, 0
      %p33 = por %p31, %p32
      %p34 = scmp.ne.s32.totalorder %s23, %s26
      %p35 = scmp.eq.s32.totalorder %s18, 1
      %p36 = por %p34, %p35
      %p37 = scmp.ne.s32.totalorder %s26, %s27
      %p38 = scmp.eq.s32.totalorder %s18, 0
      %p39 = por %p37, %p38
      %p40 = scmp.ne.s32.totalorder %s26, %s27
      %p41 = scmp.eq.s32.totalorder %s19, 1
      %p42 = por %p40, %p41
      %p44 = scmp.ne.s32.totalorder %s27, %s43
      %p45 = scmp.eq.s32.totalorder %s19, 0
      %p46 = por %p44, %p45
      %s47 = ssub.s32 %s13, %s20
      %p48 = scmp.eq.s32.totalorder %s47, 0
      %s50 = sadd.s32 %s49, 1
      %s51 = scalar_select %p48, %s49, %s50
      %p54 = pneg %p48
      %p55 = scmp.eq.s32.totalorder %s13, 1
      %p56 = por %p54, %p55
      %p57 = scmp.ne.s32.totalorder %s49, %s52
      %p58 = scmp.eq.s32.totalorder %s13, 0
      %p59 = por %p57, %p58
      %p60 = scmp.ne.s32.totalorder %s49, %s52
      %p61 = scmp.eq.s32.totalorder %s18, 1
      %p62 = por %p60, %p61
      %p63 = scmp.ne.s32.totalorder %s52, %s53
      %p64 = scmp.eq.s32.totalorder %s18, 0
      %p65 = por %p63, %p64
      %p66 = scmp.ne.s32.totalorder %s52, %s53
      %p67 = scmp.eq.s32.totalorder %s19, 1
      %p68 = por %p66, %p67
      %p70 = scmp.ne.s32.totalorder %s53, %s69
      %p71 = scmp.eq.s32.totalorder %s19, 0
      %p72 = por %p70, %p71
      %p73 = scmp.le.s32.totalorder 1, %s13
      %p74 = scmp.lt.s32.totalorder %s13, 3
      %p75 = pnand %p73, %p74
      %p76 = pneg %p75
      // Predicated region
      $region9: #{tpu_custom_call.1} parent=5 // pred_check
        _
      $region10: #{tpu_custom_call.1} parent=5 // pred_check_branch
        %78 = sbr.rel (%p75) target = $region12
      $region11: #{tpu_custom_call.1} parent=5 // pred_region
        %s79 = ssub.s32 %s13, 1
      $region12: #{tpu_custom_call.1} parent=5 // pred_fallthru
        _
      %p80 = scmp.lt.s32.totalorder %s13, 2
      // Predicated region
      $region13: #{tpu_custom_call.1} parent=5 // pred_check
        %p81 = pneg %p80
      $region14: #{tpu_custom_call.1} parent=5 // pred_check_branch
        %83 = sbr.rel (%p81) target = $region16
      $region15: #{tpu_custom_call.1} parent=5 // pred_region
        // Predicated region
        $region17: #{tpu_custom_call.1} parent=15 // pred_check
          %p84 = pneg %p33
        $region18: #{tpu_custom_call.1} parent=15 // pred_check_branch
          %86 = sbr.rel (%p84) target = $region20
        $region19: #{tpu_custom_call.1} parent=15 // pred_region
          %s87 = sand.u32 %s23, 1
          %s88 = scalar_lea.sflag [#allocation3], %s87
          %s89 = sand.u32 %s23, 1
          %s90 = smul.addr %s89, 16
          %s91 = scalar_lea.vmem [#allocation2], %s90
          %s92 = smul.u32 2, %s13
          %94 = vsyncadd %s88, 0
          %s95 = smul.addr %s92, 8
          %s96 = scalar_lea.hbm %s0, %s95
          %s97 = sshll.u32 %s96, 4
          %s98 = int_to_ptr.hbm [resolvable:$true] %s97
          %s99 = sshll.u32 %s91, 4
          %s100 = int_to_ptr.vmem [resolvable:$true] %s99
          %105 = dma.hbm_to_vmem [thread:$0]  %s98, 256, %s100, %s88, 128, 128, 8
        $region20: #{tpu_custom_call.1} parent=15 // pred_fallthru
          _
      $region16: #{tpu_custom_call.1} parent=5 // pred_fallthru
        _
      %p106 = scmp.le.s32.totalorder 1, %s13
      %p107 = scmp.lt.s32.totalorder %s13, 3
      %p108 = pnand %p106, %p107
      %p109 = pneg %p108
      // Predicated region
      $region21: #{tpu_custom_call.1} parent=5 // pred_check
        _
      $region22: #{tpu_custom_call.1} parent=5 // pred_check_branch
        %111 = sbr.rel (%p108) target = $region24
      $region23: #{tpu_custom_call.1} parent=5 // pred_region
        %s112 = ssub.s32 %s13, 1
        %s113 = sand.u32 %s26, 1
        %s114 = scalar_lea.sflag [#allocation3], %s113
        %s115 = sand.u32 %s26, 1
        %s116 = smul.addr %s115, 16
        %s117 = scalar_lea.vmem [#allocation2], %s116
        // Predicated region
        $region25: #{tpu_custom_call.1} parent=23 // pred_check
          %p118 = pneg %p39
        $region26: #{tpu_custom_call.1} parent=23 // pred_check_branch
          %120 = sbr.rel (%p118) target = $region28
        $region27: #{tpu_custom_call.1} parent=23 // pred_region
          %122 = dma.done %s114, 256
        $region28: #{tpu_custom_call.1} parent=23 // pred_fallthru
          _
        %s123 = sand.u32 %s26, 1
        %s124 = scalar_lea.sflag [#allocation3], %s123
        %s125 = sand.u32 %s26, 1
        %s126 = smul.addr %s125, 16
        %s127 = scalar_lea.vmem [#allocation2], %s126
        %p128 = pneg %p39
        %p129 = pneg %p36
        %p130 = pneg %p65
        %p131 = pneg %p62
        %s132 = sand.u32 %s52, 1
        %s133 = scalar_lea.sflag [#allocation4], %s132
        %s134 = sand.u32 %s52, 1
        %s135 = smul.addr %s134, 336
        %s136 = scalar_lea.vmem [#allocation5], %s135
        %s137 = smul.u32 2, %s18
        %s138 = smul.u32 2, %s18
        %v139 = vld [vmem:[%s117] sm:$0xff]
        %v140 = vld [vmem:[%s117 + $0x8] sm:$0xff]
        %141 = vrot.lane.b32.xlu0 %v139, 126
        %v142 = vpop.permute.xlu0 %141
        %143 = vrot.lane.b32.xlu0 %v140, 126
        %v144 = vpop.permute.xlu0 %143
        %145 = vrot.lane.b32.xlu0 %v139, 127
        %v146 = vpop.permute.xlu0 %145
        %147 = vrot.lane.b32.xlu0 %v140, 127
        %v148 = vpop.permute.xlu0 %147
        %149 = vrot.lane.b32.xlu0 %v139, 1
        %v150 = vpop.permute.xlu0 %149
        %151 = vrot.lane.b32.xlu0 %v140, 1
        %v152 = vpop.permute.xlu0 %151
        %153 = vrot.lane.b32.xlu0 %v139, 2
        %v154 = vpop.permute.xlu0 %153
        %155 = vrot.lane.b32.xlu0 %v140, 2
        %v156 = vpop.permute.xlu0 %155
        %157 = vst [vmem:[%s136] sm:$0xff] 1.0
        %158 = vst [vmem:[%s136 + $0x8] sm:$0xff] 1.0
        %s159 = scalar_lea.vmem %s136, 16 [#allocation5]
        %160 = vst [vmem:[%s159] sm:$0xff] %v142
        %161 = vst [vmem:[%s159 + $0x8] sm:$0xff] %v144
        %v162 = vmul.f32 %v142, %v142
        %v163 = vmul.f32 %v144, %v144
        %s164 = scalar_lea.vmem %s136, 96 [#allocation5]
        %165 = vst [vmem:[%s164] sm:$0xff] %v162
        %166 = vst [vmem:[%s164 + $0x8] sm:$0xff] %v163
        %v167 = vmul.f32 %v142, %v146
        %v168 = vmul.f32 %v144, %v148
        %s169 = scalar_lea.vmem %s136, 112 [#allocation5]
        %170 = vst [vmem:[%s169] sm:$0xff] %v167
        %171 = vst [vmem:[%s169 + $0x8] sm:$0xff] %v168
        %v172 = vmul.f32 %v142, %v139
        %v173 = vmul.f32 %v144, %v140
        %s174 = scalar_lea.vmem %s136, 128 [#allocation5]
        %175 = vst [vmem:[%s174] sm:$0xff] %v172
        %176 = vst [vmem:[%s174 + $0x8] sm:$0xff] %v173
        %v177 = vmul.f32 %v142, %v150
        %v178 = vmul.f32 %v144, %v152
        %s179 = scalar_lea.vmem %s136, 144 [#allocation5]
        %180 = vst [vmem:[%s179] sm:$0xff] %v177
        %181 = vst [vmem:[%s179 + $0x8] sm:$0xff] %v178
        %v182 = vmul.f32 %v142, %v154
        %v183 = vmul.f32 %v144, %v156
        %s184 = scalar_lea.vmem %s136, 160 [#allocation5]
        %185 = vst [vmem:[%s184] sm:$0xff] %v182
        %186 = vst [vmem:[%s184 + $0x8] sm:$0xff] %v183
        %s187 = scalar_lea.vmem %s136, 32 [#allocation5]
        %188 = vst [vmem:[%s187] sm:$0xff] %v146
        %189 = vst [vmem:[%s187 + $0x8] sm:$0xff] %v148
        %v190 = vmul.f32 %v146, %v146
        %v191 = vmul.f32 %v148, %v148
        %s192 = scalar_lea.vmem %s136, 176 [#allocation5]
        %193 = vst [vmem:[%s192] sm:$0xff] %v190
        %194 = vst [vmem:[%s192 + $0x8] sm:$0xff] %v191
        %v195 = vmul.f32 %v146, %v139
        %v196 = vmul.f32 %v148, %v140
        %s197 = scalar_lea.vmem %s136, 192 [#allocation5]
        %198 = vst [vmem:[%s197] sm:$0xff] %v195
        %199 = vst [vmem:[%s197 + $0x8] sm:$0xff] %v196
        %v200 = vmul.f32 %v146, %v150
        %v201 = vmul.f32 %v148, %v152
        %s202 = scalar_lea.vmem %s136, 208 [#allocation5]
        %203 = vst [vmem:[%s202] sm:$0xff] %v200
        %204 = vst [vmem:[%s202 + $0x8] sm:$0xff] %v201
        %v205 = vmul.f32 %v146, %v154
        %v206 = vmul.f32 %v148, %v156
        %s207 = scalar_lea.vmem %s136, 224 [#allocation5]
        %208 = vst [vmem:[%s207] sm:$0xff] %v205
        %209 = vst [vmem:[%s207 + $0x8] sm:$0xff] %v206
        %s210 = scalar_lea.vmem %s136, 48 [#allocation5]
        %211 = vst [vmem:[%s210] sm:$0xff] %v139
        %212 = vst [vmem:[%s210 + $0x8] sm:$0xff] %v140
        %v213 = vmul.f32 %v139, %v139
        %v214 = vmul.f32 %v140, %v140
        %s215 = scalar_lea.vmem %s136, 240 [#allocation5]
        %216 = vst [vmem:[%s215] sm:$0xff] %v213
        %217 = vst [vmem:[%s215 + $0x8] sm:$0xff] %v214
        %v218 = vmul.f32 %v139, %v150
        %v219 = vmul.f32 %v140, %v152
        %s220 = scalar_lea.vmem %s136, 256 [#allocation5]
        %221 = vst [vmem:[%s220] sm:$0xff] %v218
        %222 = vst [vmem:[%s220 + $0x8] sm:$0xff] %v219
        %v223 = vmul.f32 %v139, %v154
        %v224 = vmul.f32 %v140, %v156
        %s225 = scalar_lea.vmem %s136, 272 [#allocation5]
        %226 = vst [vmem:[%s225] sm:$0xff] %v223
        %227 = vst [vmem:[%s225 + $0x8] sm:$0xff] %v224
        %s228 = scalar_lea.vmem %s136, 64 [#allocation5]
        %229 = vst [vmem:[%s228] sm:$0xff] %v150
        %230 = vst [vmem:[%s228 + $0x8] sm:$0xff] %v152
        %v231 = vmul.f32 %v150, %v150
        %v232 = vmul.f32 %v152, %v152
        %s233 = scalar_lea.vmem %s136, 288 [#allocation5]
        %234 = vst [vmem:[%s233] sm:$0xff] %v231
        %235 = vst [vmem:[%s233 + $0x8] sm:$0xff] %v232
        %v236 = vmul.f32 %v150, %v154
        %v237 = vmul.f32 %v152, %v156
        %s238 = scalar_lea.vmem %s136, 304 [#allocation5]
        %239 = vst [vmem:[%s238] sm:$0xff] %v236
        %240 = vst [vmem:[%s238 + $0x8] sm:$0xff] %v237
        %s241 = scalar_lea.vmem %s136, 80 [#allocation5]
        %242 = vst [vmem:[%s241] sm:$0xff] %v154
        %243 = vst [vmem:[%s241 + $0x8] sm:$0xff] %v156
        %v244 = vmul.f32 %v154, %v154
        %v245 = vmul.f32 %v156, %v156
        %s246 = scalar_lea.vmem %s136, 320 [#allocation5]
        %247 = vst [vmem:[%s246] sm:$0xff] %v244
        %248 = vst [vmem:[%s246 + $0x8] sm:$0xff] %v245
        %s249 = sand.u32 %s52, 1
        %s250 = scalar_lea.sflag [#allocation4], %s249
        %s251 = sand.u32 %s52, 1
        %s252 = smul.addr %s251, 336
        %s253 = scalar_lea.vmem [#allocation5], %s252
        // Predicated region
        $region29: #{tpu_custom_call.1} parent=23 // pred_check
          %p254 = pneg %p62
        $region30: #{tpu_custom_call.1} parent=23 // pred_check_branch
          %256 = sbr.rel (%p254) target = $region32
        $region31: #{tpu_custom_call.1} parent=23 // pred_region
          #allocation7 [shape = 'u32[6]{0}', space=smem, size = 0x18, scoped, tag = 'DMA stride descriptor']
          %s257 = smul.u32 2, %s18
          %259 = vsyncadd %s250, 0
          %s260 = smul.addr %s257, 8
          %s261 = scalar_lea.hbm %s1, %s260
          %s263 = sshll.u32 1, 14
          %s264 = sxor.u32 4294967295, %s263
          %s267 = sshll.u32 7, 18
          %s268 = sxor.u32 4294967295, %s267
          %s269 = sand.u32 0, %s268
          %s271 = sor.u32 %s269, 0
          %s272 = sshll.u32 %s253, 4
          %s273 = int_to_ptr.vmem [resolvable:$true] %s272
          %s274 = sshll.u32 %s261, 4
          %s275 = int_to_ptr.hbm [resolvable:$true] %s274
          %281 = sst [smem:[#allocation7]] 256
          %s282 = scalar_lea.smem [#allocation7], 1
          %283 = sst [smem:[%s282]] 512
          %s284 = scalar_lea.smem [#allocation7], 2
          %285 = sst [smem:[%s284]] 2
          %s286 = scalar_lea.smem [#allocation7], 3
          %287 = sst [smem:[%s286]] 128
          %s288 = scalar_lea.smem [#allocation7], 4
          %289 = sst [smem:[%s288]] 128
          %s290 = scalar_lea.smem [#allocation7], 5
          %291 = sst [smem:[%s290]] 8
          %293 = dma.general %s273, 5376, %s275, %s250, [#allocation6], [#allocation7], %s271, 0
        $region32: #{tpu_custom_call.1} parent=23 // pred_fallthru
          _
      $region24: #{tpu_custom_call.1} parent=5 // pred_fallthru
        _
      %p294 = scmp.le.s32.totalorder 2, %s13
      // Predicated region
      $region33: #{tpu_custom_call.1} parent=5 // pred_check
        %p295 = pneg %p294
      $region34: #{tpu_custom_call.1} parent=5 // pred_check_branch
        %297 = sbr.rel (%p295) target = $region36
      $region35: #{tpu_custom_call.1} parent=5 // pred_region
        %s298 = ssub.s32 %s13, 2
        // Predicated region
        $region37: #{tpu_custom_call.1} parent=35 // pred_check
          %p299 = pneg %p68
        $region38: #{tpu_custom_call.1} parent=35 // pred_check_branch
          %301 = sbr.rel (%p299) target = $region40
        $region39: #{tpu_custom_call.1} parent=35 // pred_region
          %s302 = sand.u32 %s53, 1
          %s303 = scalar_lea.sflag [#allocation4], %s302
          %s304 = sand.u32 %s53, 1
          %s305 = smul.addr %s304, 336
          %s306 = scalar_lea.vmem [#allocation5], %s305
          %308 = dma.done %s303, 5376
        $region40: #{tpu_custom_call.1} parent=35 // pred_fallthru
          _
      $region36: #{tpu_custom_call.1} parent=5 // pred_fallthru
        _
    $region6: #{tpu_custom_call.1} parent=1 // loop_footer
      %s17 = sadd.s32 1, %s13
    $region7: #{tpu_custom_call.1} parent=1 // loop_footer_branch
      %12 = sbr.rel target = $region3
    $region8: #{tpu_custom_call.1} parent=1 // loop_exit
      _
    %309 = vsyncpa [#allocation3], 1
    %s310 = scalar_lea.sflag [#allocation3], 1
    %311 = vsyncpa %s310, 1
    %312 = vsyncpa [#allocation4], 1
    %s313 = scalar_lea.sflag [#allocation4], 1
    %314 = vsyncpa %s313, 1

</llo_original>
